<compile_context>
chip_gen: v7x
topology: tpu7x:2x2x1
jax: 0.10.0
libtpu: 0.0.40
codegen_flags: <defaults>
</compile_context>

<pallas_src>
import functools

import jax
import jax.numpy as jnp
from jax.experimental import pallas as pl
from jax.experimental.pallas import tpu as pltpu

BN_EPS = 1e-5


def _round_up(a, b):
    return -(-a // b) * b


def _divisors_desc(n):
    return [d for d in range(n, 0, -1) if n % d == 0]


def _vmem_limit_bytes():
    """Generation-aware VMEM budget (~75% of physical, capped at 100 MiB)."""
    cap = None
    try:
        info = pltpu.get_tpu_info()
        for name in ("vmem_capacity_bytes", "vmem_size_bytes", "vmem_bytes"):
            cap = getattr(info, name, None)
            if cap:
                break
    except Exception:
        cap = None
    if not cap:
        cap = 64 * 1024 * 1024          # conservative default (v7x per-core)
    return int(min(cap * 3 // 4, 100 * 1024 * 1024))


# ---------------------------------------------------------------------------
# Stage 1a: conv1 once -> bf16 activations + per-tile BN partial statistics.
# ---------------------------------------------------------------------------
def _conv1_stats_kernel(x_ref, w1_ref, h_ref, sum_ref, ssq_ref):
    # conv1 bias omitted: training-mode BN subtracts the batch mean, so a
    # per-channel constant bias cancels exactly (variance is shift-invariant).
    h = jnp.dot(x_ref[...], w1_ref[...], preferred_element_type=jnp.float32)
    h_ref[...] = h.astype(h_ref.dtype)                    # bf16 activations -> HBM
    tn, cr = h.shape
    hs = h.reshape(8, tn // 8, cr)                        # per-tile partial sums
    sum_ref[...] = jnp.sum(hs, axis=1)
    ssq_ref[...] = jnp.sum(hs * hs, axis=1)


# ---------------------------------------------------------------------------
# Stage 1b: fused BN affine -> ReLU -> conv2 -> bf16 weights (lane-padded).
# ---------------------------------------------------------------------------
def _weightgen_kernel(h_ref, scale_ref, shift_ref, w2_ref, b2_ref, o_ref):
    h = h_ref[...].astype(jnp.float32)
    hr = jnp.maximum(h * scale_ref[...] + shift_ref[...], 0.0)
    out = jnp.dot(hr, w2_ref[...], preferred_element_type=jnp.float32) + b2_ref[...]
    o_ref[...] = out.astype(o_ref.dtype)


# ---------------------------------------------------------------------------
# Kernel 2: involution aggregation  out = sum_k w[pixel, k, g] * x_patch_k
# ---------------------------------------------------------------------------
def _involution_kernel(xph_ref, w_ref, e3_ref, o_ref, *, K, stride, th, Wo, C):
    # xph_ref: (S2, Hc, Wcp, C) bf16  stride-phase slabs of padded input (one batch)
    # w_ref  : (th*Wo, KKGp)    bf16  per-pixel weights, k-major/g-minor, lane-padded
    # e3_ref : (KK, KKGp, C)    bf16  per-tap 0/1 group->channel selector matrices
    # o_ref  : (th*Wo, C)
    i = pl.program_id(1)
    row0 = pl.multiple_of(i * th, th)
    w = w_ref[...]                                        # hoisted full weight tile
    acc = jnp.zeros((th * Wo, C), jnp.float32)            # fp32 register accumulator
    for ki in range(K):
        pi, dr = ki % stride, ki // stride
        for pj in range(stride):
            pk = pi * stride + pj
            # One aligned row-slab load per (tap-row offset, column phase); the
            # K column windows are derived in-register with static slices.
            slab = xph_ref[pk, pl.ds(row0 + dr, th), :, :]          # (th, Wcp, C)
            for dc in range((K - 1 - pj) // stride + 1):
                k = ki * K + (pj + dc * stride)
                # Broadcast the per-group weight over its group channels on the
                # MXU; full-width LHS (no sub-128-lane slice), contraction=KKGp.
                wk_c = jnp.dot(w, e3_ref[k], preferred_element_type=jnp.float32)
                win = slab[:, dc:dc + Wo, :].reshape(th * Wo, C)
                acc = acc + wk_c * win.astype(jnp.float32)
    o_ref[...] = acc.astype(o_ref.dtype)


# ---------------------------------------------------------------------------
# Wrapper
# ---------------------------------------------------------------------------
def involution_forward(x_nhwc, params, *, kernel_size, r, stride, groups):
    B, H, W, C = x_nhwc.shape
    K, G = kernel_size, groups
    assert C % G == 0 and C % r == 0
    gc = C // G
    Cr = C // r
    KK = K * K
    KKG = KK * G
    KKGp = _round_up(KKG, 128)   # lane-dense weight stream (full-width stores)
    p = (K - 1) // 2

    # --- gap = AvgPool2d((stride, stride)) when stride > 1 (plain-JAX glue) ---
    if stride > 1:
        assert H % stride == 0 and W % stride == 0
        Hq, Wq = H // stride, W // stride
        x_pool = x_nhwc.reshape(B, Hq, stride, Wq, stride, C).mean(axis=(2, 4))
    else:
        x_pool = x_nhwc
    Ho, Wo = x_pool.shape[1], x_pool.shape[2]
    assert Wo % 8 == 0, "kernel-2 pixel reshape assumes Wo % 8 == 0"
    N = B * Ho * Wo
    x_flat = x_pool.reshape(N, C)

    # Pixel tile for stage 1: prefer the largest tile (per-step overhead); pad
    # N with zero rows if nothing divides (zero rows contribute 0 to the stats,
    # which are divided by the true N, so they don't perturb mean/var).
    tn = next((c for c in (1024, 512, 256, 128, 64, 32, 16, 8) if N % c == 0), None)
    if tn is None:
        tn = 256 if N >= 256 else _round_up(N, 8)
    Np = _round_up(N, tn)
    if Np != N:
        x_flat = jnp.pad(x_flat, ((0, Np - N), (0, 0)))
    nt = Np // tn

    # --- stage 1a: conv1 once; bf16 activations + per-tile BN partial stats --
    h_flat, psum, pssq = pl.pallas_call(
        _conv1_stats_kernel,
        out_shape=(jax.ShapeDtypeStruct((Np, Cr), jnp.bfloat16),
                   jax.ShapeDtypeStruct((8 * nt, Cr), jnp.float32),
                   jax.ShapeDtypeStruct((8 * nt, Cr), jnp.float32)),
        grid=(nt,),
        in_specs=[pl.BlockSpec((tn, C), lambda i: (i, 0)),
                  pl.BlockSpec((C, Cr), lambda i: (0, 0))],
        out_specs=(pl.BlockSpec((tn, Cr), lambda i: (i, 0)),
                   pl.BlockSpec((8, Cr), lambda i: (i, 0)),
                   pl.BlockSpec((8, Cr), lambda i: (i, 0))),
        compiler_params=pltpu.CompilerParams(dimension_semantics=("parallel",)),
    )(x_flat, params["w1"])

    s = jnp.sum(psum, axis=0, keepdims=True)
    q = jnp.sum(pssq, axis=0, keepdims=True)
    mean = s / float(N)
    # TODO(synk): for very large N switch to per-tile shifted sums / two-pass
    # variance; E[x^2]-E[x]^2 in fp32 is fine at these scales.
    var = jnp.maximum(q / float(N) - mean * mean, 0.0)        # biased (training) var
    scale = params["gamma"] * jax.lax.rsqrt(var + BN_EPS)     # (1, Cr)
    shift = params["beta"] - mean * scale                     # (1, Cr)

    # conv2 columns permuted at trace time to k-major/g-minor and zero-padded
    # to KKGp lanes (metadata-only; keeps every kernel-1b store full-width and
    # gives kernel 2 a 128-wide MXU contraction).
    perm = jnp.arange(KKG).reshape(G, KK).T.reshape(-1)
    w2_p = jnp.zeros((Cr, KKGp), params["w2"].dtype).at[:, :KKG].set(params["w2"][:, perm])
    b2_p = jnp.zeros((1, KKGp), params["b2"].dtype).at[:, :KKG].set(params["b2"][:, perm])

    # --- stage 1b: per-pixel involution weights (Np, KKGp), bf16 -------------
    w_flat = pl.pallas_call(
        _weightgen_kernel,
        out_shape=jax.ShapeDtypeStruct((Np, KKGp), jnp.bfloat16),
        grid=(nt,),
        in_specs=[pl.BlockSpec((tn, Cr), lambda i: (i, 0)),
                  pl.BlockSpec((1, Cr), lambda i: (0, 0)),
                  pl.BlockSpec((1, Cr), lambda i: (0, 0)),
                  pl.BlockSpec((Cr, KKGp), lambda i: (0, 0)),
                  pl.BlockSpec((1, KKGp), lambda i: (0, 0))],
        out_specs=pl.BlockSpec((tn, KKGp), lambda i: (i, 0)),
        compiler_params=pltpu.CompilerParams(dimension_semantics=("parallel",)),
    )(h_flat, scale, shift, w2_p, b2_p)
    w_pix = w_flat[:N].reshape(B, Ho * Wo, KKGp)

    # --- stride-phase slabs of the zero-padded input (bf16, Wc padded to 8) ---
    x_pad = jnp.pad(x_nhwc, ((0, 0), (p, p), (p, p), (0, 0))).astype(jnp.bfloat16)
    Hc = Ho + (K - 1) // stride
    Wc = Wo + (K - 1) // stride
    Wcp = _round_up(Wc, 8)
    phases = []
    for pi in range(stride):
        for pj in range(stride):
            ph = x_pad[:, pi::stride, pj::stride, :][:, :Hc, :Wc, :]
            ph = jnp.pad(ph, ((0, 0), (0, Hc - ph.shape[1]),
                              (0, Wcp - ph.shape[2]), (0, 0)))
            phases.append(ph)
    x_ph = jnp.stack(phases, axis=1)                  # (B, S2, Hc, Wcp, C) bf16
    S2 = stride * stride

    # Per-tap group -> channel selector/expansion matrices (exact 0/1 in bf16):
    # E3[k, k*G+g, c] = 1 iff channel c belongs to group g.  Padded rows are 0.
    rows = jnp.arange(KKGp)
    e3 = ((rows[None, :, None] // G == jnp.arange(KK)[:, None, None])
          & (rows[None, :, None] % G == (jnp.arange(C) // gc)[None, None, :])
          & (rows[None, :, None] < KKG)).astype(jnp.bfloat16)

    # Spatial row tile: fp32 register accumulator capped at 64 KiB of actual
    # vreg footprint (128-lane minimum occupancy).  Whole-Ho tiles are allowed
    # when B >= 2 because the batch grid axis already feeds both v7x cores.
    acc_budget = 64 * 1024
    lane_c = max(C, 128)
    th_cands = [t for t in _divisors_desc(Ho) if t * Wo * lane_c * 4 <= acc_budget] or [1]
    if B == 1 and Ho > 1:
        th_cands = [t for t in th_cands if t <= max(1, Ho // 2)] or [1]

    vmem_limit = _vmem_limit_bytes()
    slab_bytes = S2 * Hc * Wcp * C * 2
    e3_bytes = KK * KKGp * C * 2
    out_elt = x_nhwc.dtype.itemsize
    th = th_cands[-1]
    for t in th_cands:                                # largest tile that fits VMEM
        need = 2 * (slab_bytes + e3_bytes
                    + t * Wo * KKGp * 2 + t * Wo * C * out_elt) + (1 << 20)
        if need <= vmem_limit:
            th = t
            break
    # TODO(synk): if the resident phase slab alone exceeds the VMEM budget
    # (huge H*W*C), row-tile it with manual DMA (memory_space=pl.ANY); also
    # consider pipeline_mode=pl.Buffered(1) on the slab to single-buffer it.

    kern = functools.partial(_involution_kernel, K=K, stride=stride,
                             th=th, Wo=Wo, C=C)
    out2 = pl.pallas_call(
        kern,
        out_shape=jax.ShapeDtypeStruct((B, Ho * Wo, C), x_nhwc.dtype),
        grid=(B, Ho // th),
        in_specs=[
            # full padded-input phase slab stays resident per batch element
            pl.BlockSpec((None, S2, Hc, Wcp, C), lambda b, i: (b, 0, 0, 0, 0)),
            pl.BlockSpec((None, th * Wo, KKGp), lambda b, i: (b, i, 0)),
            pl.BlockSpec((KK, KKGp, C), lambda b, i: (0, 0, 0)),
        ],
        out_specs=pl.BlockSpec((None, th * Wo, C), lambda b, i: (b, i, 0)),
        compiler_params=pltpu.CompilerParams(
            dimension_semantics=("parallel", "parallel"),
            vmem_limit_bytes=vmem_limit),
    )(x_ph, w_pix, e3)
    return out2.reshape(B, Ho, Wo, C)  # NHWC, spatial size (Ho, Wo)


# ---------------------------------------------------------------------------
# Pure-JAX reference mirroring the PyTorch forward (for verification).
# It rounds the same three intermediates to bf16 that the Pallas pipeline does
# (conv1 activations, generated weights, input patches) so the comparison
# isolates kernel math from the mixed-precision policy.  conv1's bias is
# dropped in both: training-mode BN cancels it exactly.
# ---------------------------------------------------------------------------
def _reference(x_nhwc, params, *, K, r, stride, G):
    B, H, W, C = x_nhwc.shape
    gc = C // G
    p = (K - 1) // 2
    if stride > 1:
        Hq, Wq = H // stride, W // stride
        x_pool = x_nhwc.reshape(B, Hq, stride, Wq, stride, C).mean(axis=(2, 4))
    else:
        x_pool = x_nhwc
    hi = jnp.einsum("bhwc,cd->bhwd", x_pool, params["w1"],
                    precision=jax.lax.Precision.HIGHEST)
    mean = hi.mean(axis=(0, 1, 2))
    var = ((hi - mean) ** 2).mean(axis=(0, 1, 2))
    hi_b = hi.astype(jnp.bfloat16).astype(jnp.float32)          # h stored as bf16
    hn = (hi_b - mean) * jax.lax.rsqrt(var + BN_EPS) * params["gamma"][0] + params["beta"][0]
    hr = jnp.maximum(hn, 0.0)
    wgt = jnp.einsum("bhwd,de->bhwe", hr, params["w2"],
                     precision=jax.lax.Precision.HIGHEST) + params["b2"][0]
    wgt = wgt.astype(jnp.bfloat16).astype(jnp.float32)          # bf16 weights
    Ho, Wo = x_pool.shape[1], x_pool.shape[2]
    wgt = wgt.reshape(B, Ho, Wo, G, K * K)
    x_pad = jnp.pad(x_nhwc, ((0, 0), (p, p), (p, p), (0, 0)))
    x_pad = x_pad.astype(jnp.bfloat16).astype(jnp.float32)      # bf16 patches
    out = jnp.zeros((B, Ho, Wo, C), jnp.float32)
    for k in range(K * K):
        ki, kj = divmod(k, K)
        patch = x_pad[:, ki:ki + (Ho - 1) * stride + 1:stride,
                         kj:kj + (Wo - 1) * stride + 1:stride, :]
        patch = patch.reshape(B, Ho, Wo, G, gc)
        out = out + (wgt[:, :, :, :, k:k + 1] * patch).reshape(B, Ho, Wo, C)
    return out


if __name__ == "__main__":
    # Module config: Involution(input_channels=4, kernel_size=3, r=2, stride=1, groups=2)
    B, C, H, W = 2, 4, 16, 16
    K, r, stride, G = 3, 2, 1, 2
    Cr = C // r
    KKG = K * K * G

    key = jax.random.PRNGKey(0)
    kx, k1, k2, k3, k4, k5, k6 = jax.random.split(key, 7)
    x_nchw = jax.random.normal(kx, (B, C, H, W), jnp.float32)   # PyTorch-style NCHW input
    params = dict(
        w1=jax.random.normal(k1, (C, Cr), jnp.float32) * 0.5,     # conv1 1x1 weight (C -> C//r)
        b1=jax.random.normal(k2, (1, Cr), jnp.float32) * 0.1,     # conv1 bias (cancelled by BN)
        gamma=1.0 + 0.1 * jax.random.normal(k3, (1, Cr), jnp.float32),  # BN weight
        beta=0.1 * jax.random.normal(k4, (1, Cr), jnp.float32),         # BN bias
        w2=jax.random.normal(k5, (Cr, KKG), jnp.float32) * 0.5,   # conv2 1x1 weight (C//r -> K*K*G)
        b2=jax.random.normal(k6, (1, KKG), jnp.float32) * 0.1,    # conv2 bias
    )

    x_nhwc = jnp.transpose(x_nchw, (0, 2, 3, 1))
    out_nhwc = involution_forward(x_nhwc, params, kernel_size=K, r=r,
                                  stride=stride, groups=G)
    out_nhwc = jax.block_until_ready(out_nhwc)
    out_nchw = jnp.transpose(out_nhwc, (0, 3, 1, 2))
    assert out_nchw.shape == (B, C, H, W)

    ref = _reference(x_nhwc, params, K=K, r=r, stride=stride, G=G)
    max_err = float(jnp.max(jnp.abs(out_nhwc - ref)))
    # bf16 weight / activation / patch streams by design -> mixed-precision tol
    assert jnp.allclose(out_nhwc, ref, atol=4e-2, rtol=4e-2), max_err

    print("KERNEL_OK")
</pallas_src>

<mosaic_0001>
module attributes {stable_mosaic.version = 11 : i64} {
  func.func @_conv1_stats_kernel(%arg0: i32, %arg1: memref<512x4xf32, #tpu.memory_space<vmem>>, %arg2: memref<4x2xf32, #tpu.memory_space<vmem>>, %arg3: memref<512x2xbf16, #tpu.memory_space<vmem>>, %arg4: memref<8x2xf32, #tpu.memory_space<vmem>>, %arg5: memref<8x2xf32, #tpu.memory_space<vmem>>) attributes {dimension_semantics = [#tpu.dimension_semantics<parallel>], iteration_bounds = array<i64: 1>, scalar_prefetch = 0 : i64, scratch_operands = 0 : i64, tpu.core_type = #tpu.core_type<tc>, window_params = [{transform_indices = @transform_0, window_bounds = array<i64: 512, 4>}, {pipeline_mode = #tpu.pipeline_mode<synchronous>, transform_indices = @transform_1, window_bounds = array<i64: 4, 2>}, {transform_indices = @transform_2, window_bounds = array<i64: 512, 2>}, {transform_indices = @transform_3, window_bounds = array<i64: 8, 2>}, {transform_indices = @transform_4, window_bounds = array<i64: 8, 2>}]} {
    %c0 = arith.constant 0 : index
    %c0_0 = arith.constant 0 : index
    %0 = vector.load %arg1[%c0, %c0_0] : memref<512x4xf32, #tpu.memory_space<vmem>>, vector<512x4xf32>
    %c0_1 = arith.constant 0 : index
    %c0_2 = arith.constant 0 : index
    %1 = vector.load %arg2[%c0_1, %c0_2] : memref<4x2xf32, #tpu.memory_space<vmem>>, vector<4x2xf32>
    %cst = arith.constant dense<0.000000e+00> : vector<512x2xf32>
    %2 = tpu.matmul %0, %1, %cst {dimension_numbers = #tpu.dot_dimension_numbers<[1], [0], [0], [1], [0, 0, 1, 1], [], []>} : vector<512x4xf32>, vector<4x2xf32>, vector<512x2xf32> -> vector<512x2xf32>
    %3 = arith.truncf %2 : vector<512x2xf32> to vector<512x2xbf16>
    %c0_3 = arith.constant 0 : index
    %c0_4 = arith.constant 0 : index
    %4 = vector.load %arg3[%c0_3, %c0_4] : memref<512x2xbf16, #tpu.memory_space<vmem>>, vector<512x2xbf16>
    tpu.vector_store %arg3[%c0_3, %c0_4], %3 {strides = array<i32>} : memref<512x2xbf16, #tpu.memory_space<vmem>>, vector<512x2xbf16>,
    %5 = vector.shape_cast %2 : vector<512x2xf32> to vector<8x64x2xf32>
    %cst_5 = arith.constant dense<0.000000e+00> : vector<8x2xf32>
    %6 = vector.multi_reduction <add>, %5, %cst_5 [1] : vector<8x64x2xf32> to vector<8x2xf32>
    %c0_6 = arith.constant 0 : index
    %c0_7 = arith.constant 0 : index
    %7 = vector.load %arg4[%c0_6, %c0_7] : memref<8x2xf32, #tpu.memory_space<vmem>>, vector<8x2xf32>
    tpu.vector_store %arg4[%c0_6, %c0_7], %6 {strides = array<i32>} : memref<8x2xf32, #tpu.memory_space<vmem>>, vector<8x2xf32>,
    %8 = arith.mulf %5, %5 : vector<8x64x2xf32>
    %cst_8 = arith.constant dense<0.000000e+00> : vector<8x2xf32>
    %9 = vector.multi_reduction <add>, %8, %cst_8 [1] : vector<8x64x2xf32> to vector<8x2xf32>
    %c0_9 = arith.constant 0 : index
    %c0_10 = arith.constant 0 : index
    %10 = vector.load %arg5[%c0_9, %c0_10] : memref<8x2xf32, #tpu.memory_space<vmem>>, vector<8x2xf32>
    tpu.vector_store %arg5[%c0_9, %c0_10], %9 {strides = array<i32>} : memref<8x2xf32, #tpu.memory_space<vmem>>, vector<8x2xf32>,
    return
  }
  func.func @transform_0(%arg0: i32) -> (i32, i32) {
    %c0_i32 = arith.constant 0 : i32
    %c0_i32_0 = arith.constant 0 : i32
    return %arg0, %c0_i32 : i32, i32
  }
  func.func @transform_1(%arg0: i32) -> (i32, i32) {
    %c0_i32 = arith.constant 0 : i32
    %c0_i32_0 = arith.constant 0 : i32
    %c0_i32_1 = arith.constant 0 : i32
    return %c0_i32, %c0_i32_0 : i32, i32
  }
  func.func @transform_2(%arg0: i32) -> (i32, i32) {
    %c0_i32 = arith.constant 0 : i32
    %c0_i32_0 = arith.constant 0 : i32
    return %arg0, %c0_i32 : i32, i32
  }
  func.func @transform_3(%arg0: i32) -> (i32, i32) {
    %c0_i32 = arith.constant 0 : i32
    %c0_i32_0 = arith.constant 0 : i32
    return %arg0, %c0_i32 : i32, i32
  }
  func.func @transform_4(%arg0: i32) -> (i32, i32) {
    %c0_i32 = arith.constant 0 : i32
    %c0_i32_0 = arith.constant 0 : i32
    return %arg0, %c0_i32 : i32, i32
  }
}

</mosaic_0001>

<llo_original>
// kernel: tpu_custom_call.1
$region0: #{tpu_custom_call.1}
  #allocation0 [shape = 'u32[]', space=smem, size = 0x4, offset = 0x4, fixed_abs, tag = 'smem constant byte address 0x4 - core index']
  #allocation1 [shape = 'u32[144,128]{1,0:T(1,128)}', space=vmem, size = 0x12000, scoped, tag = 'internal scratch']
  %s0 = inlined_call_operand.vmem [shape: f32[512,4], index: 0, kind: input, shape index: {}]
  %s1 = inlined_call_operand.vmem [shape: f32[4,2], index: 1, kind: input, shape index: {}]
  %s2 = inlined_call_operand.vmem [shape: bf16[512,2], index: 2, kind: output, shape index: {0}]
  %s3 = inlined_call_operand.vmem [shape: f32[8,2], index: 3, kind: output, shape index: {1}]
  %s4 = inlined_call_operand.vmem [shape: f32[8,2], index: 4, kind: output, shape index: {2}]
  %5 = xla_tuple %s2, %s3, %s4
  %s6 = sld [smem:[#allocation0]]
  $region34: #{tpu_custom_call.1} parent=0
    _
  %s8 = ssub.s32 1, %s6
  %s9 = scalar_select 0, %s8, %s6
  // Predicated region
  $region2: #{tpu_custom_call.1} parent=0 // pred_check
    _
  $region3: #{tpu_custom_call.1} parent=0 // pred_check_branch
    %11 = sbr.rel (0) target = $region5
  $region4: #{tpu_custom_call.1} parent=0 // pred_region
    _
  $region5: #{tpu_custom_call.1} parent=0 // pred_fallthru
    _
  // Predicated region
  $region6: #{tpu_custom_call.1} parent=0 // pred_check
    _
  $region7: #{tpu_custom_call.1} parent=0 // pred_check_branch
    %13 = sbr.rel (0) target = $region9
  $region8: #{tpu_custom_call.1} parent=0 // pred_region
    _
  $region9: #{tpu_custom_call.1} parent=0 // pred_fallthru
    _
  %v14 = vld [vmem:[%s0] sm:$0xff]
  %v15 = vld [vmem:[%s0 + $0x8] sm:$0xff]
  %v16 = vld [vmem:[%s0 + $0x10] sm:$0xff]
  %v17 = vld [vmem:[%s0 + $0x18] sm:$0xff]
  %v18 = vld [vmem:[%s0 + $0x20] sm:$0xff]
  %v19 = vld [vmem:[%s0 + $0x28] sm:$0xff]
  %v20 = vld [vmem:[%s0 + $0x30] sm:$0xff]
  %v21 = vld [vmem:[%s0 + $0x38] sm:$0xff]
  %v22 = vld [vmem:[%s0 + $0x40] sm:$0xff]
  %v23 = vld [vmem:[%s0 + $0x48] sm:$0xff]
  %v24 = vld [vmem:[%s0 + $0x50] sm:$0xff]
  %v25 = vld [vmem:[%s0 + $0x58] sm:$0xff]
  %v26 = vld [vmem:[%s0 + $0x60] sm:$0xff]
  %v27 = vld [vmem:[%s0 + $0x68] sm:$0xff]
  %v28 = vld [vmem:[%s0 + $0x70] sm:$0xff]
  %v29 = vld [vmem:[%s0 + $0x78] sm:$0xff]
  %v30 = vld [vmem:[%s0 + $0x80] sm:$0xff]
  %v31 = vld [vmem:[%s0 + $0x88] sm:$0xff]
  %v32 = vld [vmem:[%s0 + $0x90] sm:$0xff]
  %v33 = vld [vmem:[%s0 + $0x98] sm:$0xff]
  %v34 = vld [vmem:[%s0 + $0xa0] sm:$0xff]
  %v35 = vld [vmem:[%s0 + $0xa8] sm:$0xff]
  %v36 = vld [vmem:[%s0 + $0xb0] sm:$0xff]
  %v37 = vld [vmem:[%s0 + $0xb8] sm:$0xff]
  %v38 = vld [vmem:[%s0 + $0xc0] sm:$0xff]
  %v39 = vld [vmem:[%s0 + $0xc8] sm:$0xff]
  %v40 = vld [vmem:[%s0 + $0xd0] sm:$0xff]
  %v41 = vld [vmem:[%s0 + $0xd8] sm:$0xff]
  %v42 = vld [vmem:[%s0 + $0xe0] sm:$0xff]
  %v43 = vld [vmem:[%s0 + $0xe8] sm:$0xff]
  %v44 = vld [vmem:[%s0 + $0xf0] sm:$0xff]
  %v45 = vld [vmem:[%s0 + $0xf8] sm:$0xff]
  %v46 = vld [vmem:[%s0 + $0x100] sm:$0xff]
  %v47 = vld [vmem:[%s0 + $0x108] sm:$0xff]
  %v48 = vld [vmem:[%s0 + $0x110] sm:$0xff]
  %v49 = vld [vmem:[%s0 + $0x118] sm:$0xff]
  %v50 = vld [vmem:[%s0 + $0x120] sm:$0xff]
  %v51 = vld [vmem:[%s0 + $0x128] sm:$0xff]
  %v52 = vld [vmem:[%s0 + $0x130] sm:$0xff]
  %v53 = vld [vmem:[%s0 + $0x138] sm:$0xff]
  %v54 = vld [vmem:[%s0 + $0x140] sm:$0xff]
  %v55 = vld [vmem:[%s0 + $0x148] sm:$0xff]
  %v56 = vld [vmem:[%s0 + $0x150] sm:$0xff]
  %v57 = vld [vmem:[%s0 + $0x158] sm:$0xff]
  %v58 = vld [vmem:[%s0 + $0x160] sm:$0xff]
  %v59 = vld [vmem:[%s0 + $0x168] sm:$0xff]
  %v60 = vld [vmem:[%s0 + $0x170] sm:$0xff]
  %v61 = vld [vmem:[%s0 + $0x178] sm:$0xff]
  %v62 = vld [vmem:[%s0 + $0x180] sm:$0xff]
  %v63 = vld [vmem:[%s0 + $0x188] sm:$0xff]
  %v64 = vld [vmem:[%s0 + $0x190] sm:$0xff]
  %v65 = vld [vmem:[%s0 + $0x198] sm:$0xff]
  %v66 = vld [vmem:[%s0 + $0x1a0] sm:$0xff]
  %v67 = vld [vmem:[%s0 + $0x1a8] sm:$0xff]
  %v68 = vld [vmem:[%s0 + $0x1b0] sm:$0xff]
  %v69 = vld [vmem:[%s0 + $0x1b8] sm:$0xff]
  %v70 = vld [vmem:[%s0 + $0x1c0] sm:$0xff]
  %v71 = vld [vmem:[%s0 + $0x1c8] sm:$0xff]
  %v72 = vld [vmem:[%s0 + $0x1d0] sm:$0xff]
  %v73 = vld [vmem:[%s0 + $0x1d8] sm:$0xff]
  %v74 = vld [vmem:[%s0 + $0x1e0] sm:$0xff]
  %v75 = vld [vmem:[%s0 + $0x1e8] sm:$0xff]
  %v76 = vld [vmem:[%s0 + $0x1f0] sm:$0xff]
  %v77 = vld [vmem:[%s0 + $0x1f8] sm:$0xff]
  %v78 = vld [vmem:[%s1] sm:$0xf]
  %vm79 = vcmask 31744
  %v81 = vsel %vm79, %v14, 0
  %v84 = vsel %vm79, %v15, 0
  %v87 = vsel %vm79, %v16, 0
  %v90 = vsel %vm79, %v17, 0
  %v93 = vsel %vm79, %v18, 0
  %v96 = vsel %vm79, %v19, 0
  %v99 = vsel %vm79, %v20, 0
  %v102 = vsel %vm79, %v21, 0
  %v105 = vsel %vm79, %v22, 0
  %v108 = vsel %vm79, %v23, 0
  %v111 = vsel %vm79, %v24, 0
  %v114 = vsel %vm79, %v25, 0
  %v117 = vsel %vm79, %v26, 0
  %v120 = vsel %vm79, %v27, 0
  %v123 = vsel %vm79, %v28, 0
  %v126 = vsel %vm79, %v29, 0
  %v129 = vsel %vm79, %v30, 0
  %v132 = vsel %vm79, %v31, 0
  %v135 = vsel %vm79, %v32, 0
  %v138 = vsel %vm79, %v33, 0
  %v141 = vsel %vm79, %v34, 0
  %v144 = vsel %vm79, %v35, 0
  %v147 = vsel %vm79, %v36, 0
  %v150 = vsel %vm79, %v37, 0
  %v153 = vsel %vm79, %v38, 0
  %v156 = vsel %vm79, %v39, 0
  %v159 = vsel %vm79, %v40, 0
  %v162 = vsel %vm79, %v41, 0
  %v165 = vsel %vm79, %v42, 0
  %v168 = vsel %vm79, %v43, 0
  %v171 = vsel %vm79, %v44, 0
  %v174 = vsel %vm79, %v45, 0
  %v177 = vsel %vm79, %v46, 0
  %v180 = vsel %vm79, %v47, 0
  %v183 = vsel %vm79, %v48, 0
  %v186 = vsel %vm79, %v49, 0
  %v189 = vsel %vm79, %v50, 0
  %v192 = vsel %vm79, %v51, 0
  %v195 = vsel %vm79, %v52, 0
  %v198 = vsel %vm79, %v53, 0
  %v201 = vsel %vm79, %v54, 0
  %v204 = vsel %vm79, %v55, 0
  %v207 = vsel %vm79, %v56, 0
  %v210 = vsel %vm79, %v57, 0
  %v213 = vsel %vm79, %v58, 0
  %v216 = vsel %vm79, %v59, 0
  %v219 = vsel %vm79, %v60, 0
  %v222 = vsel %vm79, %v61, 0
  %v225 = vsel %vm79, %v62, 0
  %v228 = vsel %vm79, %v63, 0
  %v231 = vsel %vm79, %v64, 0
  %v234 = vsel %vm79, %v65, 0
  %v237 = vsel %vm79, %v66, 0
  %v240 = vsel %vm79, %v67, 0
  %v243 = vsel %vm79, %v68, 0
  %v246 = vsel %vm79, %v69, 0
  %v249 = vsel %vm79, %v70, 0
  %v252 = vsel %vm79, %v71, 0
  %v255 = vsel %vm79, %v72, 0
  %v258 = vsel %vm79, %v73, 0
  %v261 = vsel %vm79, %v74, 0
  %v264 = vsel %vm79, %v75, 0
  %v267 = vsel %vm79, %v76, 0
  %v270 = vsel %vm79, %v77, 0
  %vm272 = vcmask 1043456
  %v274 = vsel %vm272, %v78, 0
  %276 = vmatprep.subr.mxu0 0.0
  %277 = vmatpush1.msra.mxu0 %v274
  %278 = vmatprep.subr.mxu0 0.0
  %279 = vmatpush1.msra.mxu0 0.0
  %280 = vmatprep.subr.mxu0 0.0
  %281 = vmatpush1.msra.mxu0 0.0
  %282 = vmatprep.subr.mxu0 0.0
  %283 = vmatpush1.msra.mxu0 0.0
  %284 = vmatprep.subr.mxu0 0.0
  %285 = vmatpush1.msra.mxu0 0.0
  %286 = vmatprep.subr.mxu0 0.0
  %287 = vmatpush1.msra.mxu0 0.0
  %288 = vmatprep.subr.mxu0 0.0
  %289 = vmatpush1.msra.mxu0 0.0
  %290 = vmatprep.subr.mxu0 0.0
  %291 = vmatpush1.msra.mxu0 0.0
  %292 = vmatprep.subr.mxu0 0.0
  %293 = vmatpush1.msra.mxu0 0.0
  %294 = vmatprep.subr.mxu0 0.0
  %295 = vmatpush1.msra.mxu0 0.0
  %296 = vmatprep.subr.mxu0 0.0
  %297 = vmatpush1.msra.mxu0 0.0
  %298 = vmatprep.subr.mxu0 0.0
  %299 = vmatpush1.msra.mxu0 0.0
  %300 = vmatprep.subr.mxu0 0.0
  %301 = vmatpush1.msra.mxu0 0.0
  %302 = vmatprep.subr.mxu0 0.0
  %303 = vmatpush1.msra.mxu0 0.0
  %304 = vmatprep.subr.mxu0 0.0
  %305 = vmatpush1.msra.mxu0 0.0
  %306 = vmatprep.subr.mxu0 0.0
  %307 = vmatpush1.msra.mxu0 0.0
  %308 = vmatprep.subr.mxu0 0.0
  %309 = vmatpush1.msra.mxu0 0.0
  %310 = vmatprep.subr.mxu0 0.0
  %311 = vmatpush1.msra.mxu0 0.0
  %312 = vmatprep.subr.mxu0 0.0
  %313 = vmatpush1.msra.mxu0 0.0
  %314 = vmatprep.subr.mxu0 0.0
  %315 = vmatpush1.msra.mxu0 0.0
  %316 = vmatprep.subr.mxu0 0.0
  %317 = vmatpush1.msra.mxu0 0.0
  %318 = vmatprep.subr.mxu0 0.0
  %319 = vmatpush1.msra.mxu0 0.0
  %320 = vmatprep.subr.mxu0 0.0
  %321 = vmatpush1.msra.mxu0 0.0
  %322 = vmatprep.subr.mxu0 0.0
  %323 = vmatpush1.msra.mxu0 0.0
  %324 = vmatprep.subr.mxu0 0.0
  %325 = vmatpush1.msra.mxu0 0.0
  %326 = vmatprep.subr.mxu0 0.0
  %327 = vmatpush1.msra.mxu0 0.0
  %328 = vmatprep.subr.mxu0 0.0
  %329 = vmatpush1.msra.mxu0 0.0
  %330 = vmatprep.subr.mxu0 0.0
  %331 = vmatpush1.msra.mxu0 0.0
  %332 = vmatprep.subr.mxu0 0.0
  %333 = vmatpush1.msra.mxu0 0.0
  %334 = vmatprep.subr.mxu0 0.0
  %335 = vmatpush1.msra.mxu0 0.0
  %336 = vmatprep.subr.mxu0 0.0
  %337 = vmatpush1.msra.mxu0 0.0
  %338 = vmatprep.subr.mxu0 0.0
  %339 = vmatpush1.msra.mxu0 0.0
  %340 = vmatprep.mubr.f32.mxu0 0.0
  %341 = vmatmul.mubr.f32.gmra.mrb[0].mxu0 %v81
  %v342 = vpop.f32.mrb[0].mxu0
  %v343 = vadd.f32 0.0, %v342
  %v344 = vpop.f32.mrb[0].mxu0
  %345 = vmatprep.mubr.f32.mxu0 0.0
  %346 = vmatmul.mubr.f32.gmra.mrb[0].mxu0 %v84
  %v347 = vpop.f32.mrb[0].mxu0
  %v348 = vadd.f32 0.0, %v347
  %v349 = vpop.f32.mrb[0].mxu0
  %350 = vmatprep.mubr.f32.mxu0 0.0
  %351 = vmatmul.mubr.f32.gmra.mrb[0].mxu0 %v87
  %v352 = vpop.f32.mrb[0].mxu0
  %v353 = vadd.f32 0.0, %v352
  %v354 = vpop.f32.mrb[0].mxu0
  %355 = vmatprep.mubr.f32.mxu0 0.0
  %356 = vmatmul.mubr.f32.gmra.mrb[0].mxu0 %v90
  %v357 = vpop.f32.mrb[0].mxu0
  %v358 = vadd.f32 0.0, %v357
  %v359 = vpop.f32.mrb[0].mxu0
  %360 = vmatprep.mubr.f32.mxu0 0.0
  %361 = vmatmul.mubr.f32.gmra.mrb[0].mxu0 %v93
  %v362 = vpop.f32.mrb[0].mxu0
  %v363 = vadd.f32 0.0, %v362
  %v364 = vpop.f32.mrb[0].mxu0
  %365 = vmatprep.mubr.f32.mxu0 0.0
  %366 = vmatmul.mubr.f32.gmra.mrb[0].mxu0 %v96
  %v367 = vpop.f32.mrb[0].mxu0
  %v368 = vadd.f32 0.0, %v367
  %v369 = vpop.f32.mrb[0].mxu0
  %370 = vmatprep.mubr.f32.mxu0 0.0
  %371 = vmatmul.mubr.f32.gmra.mrb[0].mxu0 %v99
  %v372 = vpop.f32.mrb[0].mxu0
  %v373 = vadd.f32 0.0, %v372
  %v374 = vpop.f32.mrb[0].mxu0
  %375 = vmatprep.mubr.f32.mxu0 0.0
  %376 = vmatmul.mubr.f32.gmra.mrb[0].mxu0 %v102
  %v377 = vpop.f32.mrb[0].mxu0
  %v378 = vadd.f32 0.0, %v377
  %v379 = vpop.f32.mrb[0].mxu0
  %380 = vmatprep.mubr.f32.mxu0 0.0
  %381 = vmatmul.mubr.f32.gmra.mrb[0].mxu0 %v105
  %v382 = vpop.f32.mrb[0].mxu0
  %v383 = vadd.f32 0.0, %v382
  %v384 = vpop.f32.mrb[0].mxu0
  %385 = vmatprep.mubr.f32.mxu0 0.0
  %386 = vmatmul.mubr.f32.gmra.mrb[0].mxu0 %v108
  %v387 = vpop.f32.mrb[0].mxu0
  %v388 = vadd.f32 0.0, %v387
  %v389 = vpop.f32.mrb[0].mxu0
  %390 = vmatprep.mubr.f32.mxu0 0.0
  %391 = vmatmul.mubr.f32.gmra.mrb[0].mxu0 %v111
  %v392 = vpop.f32.mrb[0].mxu0
  %v393 = vadd.f32 0.0, %v392
  %v394 = vpop.f32.mrb[0].mxu0
  %395 = vmatprep.mubr.f32.mxu0 0.0
  %396 = vmatmul.mubr.f32.gmra.mrb[0].mxu0 %v114
  %v397 = vpop.f32.mrb[0].mxu0
  %v398 = vadd.f32 0.0, %v397
  %v399 = vpop.f32.mrb[0].mxu0
  %400 = vmatprep.mubr.f32.mxu0 0.0
  %401 = vmatmul.mubr.f32.gmra.mrb[0].mxu0 %v117
  %v402 = vpop.f32.mrb[0].mxu0
  %v403 = vadd.f32 0.0, %v402
  %v404 = vpop.f32.mrb[0].mxu0
  %405 = vmatprep.mubr.f32.mxu0 0.0
  %406 = vmatmul.mubr.f32.gmra.mrb[0].mxu0 %v120
  %v407 = vpop.f32.mrb[0].mxu0
  %v408 = vadd.f32 0.0, %v407
  %v409 = vpop.f32.mrb[0].mxu0
  %410 = vmatprep.mubr.f32.mxu0 0.0
  %411 = vmatmul.mubr.f32.gmra.mrb[0].mxu0 %v123
  %v412 = vpop.f32.mrb[0].mxu0
  %v413 = vadd.f32 0.0, %v412
  %v414 = vpop.f32.mrb[0].mxu0
  %415 = vmatprep.mubr.f32.mxu0 0.0
  %416 = vmatmul.mubr.f32.gmra.mrb[0].mxu0 %v126
  %v417 = vpop.f32.mrb[0].mxu0
  %v418 = vadd.f32 0.0, %v417
  %v419 = vpop.f32.mrb[0].mxu0
  %420 = vmatprep.mubr.f32.mxu0 0.0
  %421 = vmatmul.mubr.f32.gmra.mrb[0].mxu0 %v129
  %v422 = vpop.f32.mrb[0].mxu0
  %v423 = vadd.f32 0.0, %v422
  %v424 = vpop.f32.mrb[0].mxu0
  %425 = vmatprep.mubr.f32.mxu0 0.0
  %426 = vmatmul.mubr.f32.gmra.mrb[0].mxu0 %v132
  %v427 = vpop.f32.mrb[0].mxu0
  %v428 = vadd.f32 0.0, %v427
  %v429 = vpop.f32.mrb[0].mxu0
  %430 = vmatprep.mubr.f32.mxu0 0.0
  %431 = vmatmul.mubr.f32.gmra.mrb[0].mxu0 %v135
  %v432 = vpop.f32.mrb[0].mxu0
  %v433 = vadd.f32 0.0, %v432
  %v434 = vpop.f32.mrb[0].mxu0
  %435 = vmatprep.mubr.f32.mxu0 0.0
  %436 = vmatmul.mubr.f32.gmra.mrb[0].mxu0 %v138
  %v437 = vpop.f32.mrb[0].mxu0
  %v438 = vadd.f32 0.0, %v437
  %v439 = vpop.f32.mrb[0].mxu0
  %440 = vmatprep.mubr.f32.mxu0 0.0
  %441 = vmatmul.mubr.f32.gmra.mrb[0].mxu0 %v141
  %v442 = vpop.f32.mrb[0].mxu0
  %v443 = vadd.f32 0.0, %v442
  %v444 = vpop.f32.mrb[0].mxu0
  %445 = vmatprep.mubr.f32.mxu0 0.0
  %446 = vmatmul.mubr.f32.gmra.mrb[0].mxu0 %v144
  %v447 = vpop.f32.mrb[0].mxu0
  %v448 = vadd.f32 0.0, %v447
  %v449 = vpop.f32.mrb[0].mxu0
  %450 = vmatprep.mubr.f32.mxu0 0.0
  %451 = vmatmul.mubr.f32.gmra.mrb[0].mxu0 %v147
  %v452 = vpop.f32.mrb[0].mxu0
  %v453 = vadd.f32 0.0, %v452
  %v454 = vpop.f32.mrb[0].mxu0
  %455 = vmatprep.mubr.f32.mxu0 0.0
  %456 = vmatmul.mubr.f32.gmra.mrb[0].mxu0 %v150
  %v457 = vpop.f32.mrb[0].mxu0
  %v458 = vadd.f32 0.0, %v457
  %v459 = vpop.f32.mrb[0].mxu0
  %460 = vmatprep.mubr.f32.mxu0 0.0
  %461 = vmatmul.mubr.f32.gmra.mrb[0].mxu0 %v153
  %v462 = vpop.f32.mrb[0].mxu0
  %v463 = vadd.f32 0.0, %v462
  %v464 = vpop.f32.mrb[0].mxu0
  %465 = vmatprep.mubr.f32.mxu0 0.0
  %466 = vmatmul.mubr.f32.gmra.mrb[0].mxu0 %v156
  %v467 = vpop.f32.mrb[0].mxu0
  %v468 = vadd.f32 0.0, %v467
  %v469 = vpop.f32.mrb[0].mxu0
  %470 = vmatprep.mubr.f32.mxu0 0.0
  %471 = vmatmul.mubr.f32.gmra.mrb[0].mxu0 %v159
  %v472 = vpop.f32.mrb[0].mxu0
  %v473 = vadd.f32 0.0, %v472
  %v474 = vpop.f32.mrb[0].mxu0
  %475 = vmatprep.mubr.f32.mxu0 0.0
  %476 = vmatmul.mubr.f32.gmra.mrb[0].mxu0 %v162
  %v477 = vpop.f32.mrb[0].mxu0
  %v478 = vadd.f32 0.0, %v477
  %v479 = vpop.f32.mrb[0].mxu0
  %480 = vmatprep.mubr.f32.mxu0 0.0
  %481 = vmatmul.mubr.f32.gmra.mrb[0].mxu0 %v165
  %v482 = vpop.f32.mrb[0].mxu0
  %v483 = vadd.f32 0.0, %v482
  %v484 = vpop.f32.mrb[0].mxu0
  %485 = vmatprep.mubr.f32.mxu0 0.0
  %486 = vmatmul.mubr.f32.gmra.mrb[0].mxu0 %v168
  %v487 = vpop.f32.mrb[0].mxu0
  %v488 = vadd.f32 0.0, %v487
  %v489 = vpop.f32.mrb[0].mxu0
  %490 = vmatprep.mubr.f32.mxu0 0.0
  %491 = vmatmul.mubr.f32.gmra.mrb[0].mxu0 %v171
  %v492 = vpop.f32.mrb[0].mxu0
  %v493 = vadd.f32 0.0, %v492
  %v494 = vpop.f32.mrb[0].mxu0
  %495 = vmatprep.mubr.f32.mxu0 0.0
  %496 = vmatmul.mubr.f32.gmra.mrb[0].mxu0 %v174
  %v497 = vpop.f32.mrb[0].mxu0
  %v498 = vadd.f32 0.0, %v497
  %v499 = vpop.f32.mrb[0].mxu0
  %500 = vmatprep.mubr.f32.mxu0 0.0
  %501 = vmatmul.mubr.f32.gmra.mrb[0].mxu0 %v177
  %v502 = vpop.f32.mrb[0].mxu0
  %v503 = vadd.f32 0.0, %v502
  %v504 = vpop.f32.mrb[0].mxu0
  %505 = vmatprep.mubr.f32.mxu0 0.0
  %506 = vmatmul.mubr.f32.gmra.mrb[0].mxu0 %v180
  %v507 = vpop.f32.mrb[0].mxu0
  %v508 = vadd.f32 0.0, %v507
  %v509 = vpop.f32.mrb[0].mxu0
  %510 = vmatprep.mubr.f32.mxu0 0.0
  %511 = vmatmul.mubr.f32.gmra.mrb[0].mxu0 %v183
  %v512 = vpop.f32.mrb[0].mxu0
  %v513 = vadd.f32 0.0, %v512
  %v514 = vpop.f32.mrb[0].mxu0
  %515 = vmatprep.mubr.f32.mxu0 0.0
  %516 = vmatmul.mubr.f32.gmra.mrb[0].mxu0 %v186
  %v517 = vpop.f32.mrb[0].mxu0
  %v518 = vadd.f32 0.0, %v517
  %v519 = vpop.f32.mrb[0].mxu0
  %520 = vmatprep.mubr.f32.mxu0 0.0
  %521 = vmatmul.mubr.f32.gmra.mrb[0].mxu0 %v189
  %v522 = vpop.f32.mrb[0].mxu0
  %v523 = vadd.f32 0.0, %v522
  %v524 = vpop.f32.mrb[0].mxu0
  %525 = vmatprep.mubr.f32.mxu0 0.0
  %526 = vmatmul.mubr.f32.gmra.mrb[0].mxu0 %v192
  %v527 = vpop.f32.mrb[0].mxu0
  %v528 = vadd.f32 0.0, %v527
  %v529 = vpop.f32.mrb[0].mxu0
  %530 = vmatprep.mubr.f32.mxu0 0.0
  %531 = vmatmul.mubr.f32.gmra.mrb[0].mxu0 %v195
  %v532 = vpop.f32.mrb[0].mxu0
  %v533 = vadd.f32 0.0, %v532
  %v534 = vpop.f32.mrb[0].mxu0
  %535 = vmatprep.mubr.f32.mxu0 0.0
  %536 = vmatmul.mubr.f32.gmra.mrb[0].mxu0 %v198
  %v537 = vpop.f32.mrb[0].mxu0
  %v538 = vadd.f32 0.0, %v537
  %v539 = vpop.f32.mrb[0].mxu0
  %540 = vmatprep.mubr.f32.mxu0 0.0
  %541 = vmatmul.mubr.f32.gmra.mrb[0].mxu0 %v201
  %v542 = vpop.f32.mrb[0].mxu0
  %v543 = vadd.f32 0.0, %v542
  %v544 = vpop.f32.mrb[0].mxu0
  %545 = vmatprep.mubr.f32.mxu0 0.0
  %546 = vmatmul.mubr.f32.gmra.mrb[0].mxu0 %v204
  %v547 = vpop.f32.mrb[0].mxu0
  %v548 = vadd.f32 0.0, %v547
  %v549 = vpop.f32.mrb[0].mxu0
  %550 = vmatprep.mubr.f32.mxu0 0.0
  %551 = vmatmul.mubr.f32.gmra.mrb[0].mxu0 %v207
  %v552 = vpop.f32.mrb[0].mxu0
  %v553 = vadd.f32 0.0, %v552
  %v554 = vpop.f32.mrb[0].mxu0
  %555 = vmatprep.mubr.f32.mxu0 0.0
  %556 = vmatmul.mubr.f32.gmra.mrb[0].mxu0 %v210
  %v557 = vpop.f32.mrb[0].mxu0
  %v558 = vadd.f32 0.0, %v557
  %v559 = vpop.f32.mrb[0].mxu0
  %560 = vmatprep.mubr.f32.mxu0 0.0
  %561 = vmatmul.mubr.f32.gmra.mrb[0].mxu0 %v213
  %v562 = vpop.f32.mrb[0].mxu0
  %v563 = vadd.f32 0.0, %v562
  %v564 = vpop.f32.mrb[0].mxu0
  %565 = vmatprep.mubr.f32.mxu0 0.0
  %566 = vmatmul.mubr.f32.gmra.mrb[0].mxu0 %v216
  %v567 = vpop.f32.mrb[0].mxu0
  %v568 = vadd.f32 0.0, %v567
  %v569 = vpop.f32.mrb[0].mxu0
  %570 = vmatprep.mubr.f32.mxu0 0.0
  %571 = vmatmul.mubr.f32.gmra.mrb[0].mxu0 %v219
  %v572 = vpop.f32.mrb[0].mxu0
  %v573 = vadd.f32 0.0, %v572
  %v574 = vpop.f32.mrb[0].mxu0
  %575 = vmatprep.mubr.f32.mxu0 0.0
  %576 = vmatmul.mubr.f32.gmra.mrb[0].mxu0 %v222
  %v577 = vpop.f32.mrb[0].mxu0
  %v578 = vadd.f32 0.0, %v577
  %v579 = vpop.f32.mrb[0].mxu0
  %580 = vmatprep.mubr.f32.mxu0 0.0
  %581 = vmatmul.mubr.f32.gmra.mrb[0].mxu0 %v225
  %v582 = vpop.f32.mrb[0].mxu0
  %v583 = vadd.f32 0.0, %v582
  %v584 = vpop.f32.mrb[0].mxu0
  %585 = vmatprep.mubr.f32.mxu0 0.0
  %586 = vmatmul.mubr.f32.gmra.mrb[0].mxu0 %v228
  %v587 = vpop.f32.mrb[0].mxu0
  %v588 = vadd.f32 0.0, %v587
  %v589 = vpop.f32.mrb[0].mxu0
  %590 = vmatprep.mubr.f32.mxu0 0.0
  %591 = vmatmul.mubr.f32.gmra.mrb[0].mxu0 %v231
  %v592 = vpop.f32.mrb[0].mxu0
  %v593 = vadd.f32 0.0, %v592
  %v594 = vpop.f32.mrb[0].mxu0
  %595 = vmatprep.mubr.f32.mxu0 0.0
  %596 = vmatmul.mubr.f32.gmra.mrb[0].mxu0 %v234
  %v597 = vpop.f32.mrb[0].mxu0
  %v598 = vadd.f32 0.0, %v597
  %v599 = vpop.f32.mrb[0].mxu0
  %600 = vmatprep.mubr.f32.mxu0 0.0
  %601 = vmatmul.mubr.f32.gmra.mrb[0].mxu0 %v237
  %v602 = vpop.f32.mrb[0].mxu0
  %v603 = vadd.f32 0.0, %v602
  %v604 = vpop.f32.mrb[0].mxu0
  %605 = vmatprep.mubr.f32.mxu0 0.0
  %606 = vmatmul.mubr.f32.gmra.mrb[0].mxu0 %v240
  %v607 = vpop.f32.mrb[0].mxu0
  %v608 = vadd.f32 0.0, %v607
  %v609 = vpop.f32.mrb[0].mxu0
  %610 = vmatprep.mubr.f32.mxu0 0.0
  %611 = vmatmul.mubr.f32.gmra.mrb[0].mxu0 %v243
  %v612 = vpop.f32.mrb[0].mxu0
  %v613 = vadd.f32 0.0, %v612
  %v614 = vpop.f32.mrb[0].mxu0
  %615 = vmatprep.mubr.f32.mxu0 0.0
  %616 = vmatmul.mubr.f32.gmra.mrb[0].mxu0 %v246
  %v617 = vpop.f32.mrb[0].mxu0
  %v618 = vadd.f32 0.0, %v617
  %v619 = vpop.f32.mrb[0].mxu0
  %620 = vmatprep.mubr.f32.mxu0 0.0
  %621 = vmatmul.mubr.f32.gmra.mrb[0].mxu0 %v249
  %v622 = vpop.f32.mrb[0].mxu0
  %v623 = vadd.f32 0.0, %v622
  %v624 = vpop.f32.mrb[0].mxu0
  %625 = vmatprep.mubr.f32.mxu0 0.0
  %626 = vmatmul.mubr.f32.gmra.mrb[0].mxu0 %v252
  %v627 = vpop.f32.mrb[0].mxu0
  %v628 = vadd.f32 0.0, %v627
  %v629 = vpop.f32.mrb[0].mxu0
  %630 = vmatprep.mubr.f32.mxu0 0.0
  %631 = vmatmul.mubr.f32.gmra.mrb[0].mxu0 %v255
  %v632 = vpop.f32.mrb[0].mxu0
  %v633 = vadd.f32 0.0, %v632
  %v634 = vpop.f32.mrb[0].mxu0
  %635 = vmatprep.mubr.f32.mxu0 0.0
  %636 = vmatmul.mubr.f32.gmra.mrb[0].mxu0 %v258
  %v637 = vpop.f32.mrb[0].mxu0
  %v638 = vadd.f32 0.0, %v637
  %v639 = vpop.f32.mrb[0].mxu0
  %640 = vmatprep.mubr.f32.mxu0 0.0
  %641 = vmatmul.mubr.f32.gmra.mrb[0].mxu0 %v261
  %v642 = vpop.f32.mrb[0].mxu0
  %v643 = vadd.f32 0.0, %v642
  %v644 = vpop.f32.mrb[0].mxu0
  %645 = vmatprep.mubr.f32.mxu0 0.0
  %646 = vmatmul.mubr.f32.gmra.mrb[0].mxu0 %v264
  %v647 = vpop.f32.mrb[0].mxu0
  %v648 = vadd.f32 0.0, %v647
  %v649 = vpop.f32.mrb[0].mxu0
  %650 = vmatprep.mubr.f32.mxu0 0.0
  %651 = vmatmul.mubr.f32.gmra.mrb[0].mxu0 %v267
  %v652 = vpop.f32.mrb[0].mxu0
  %v653 = vadd.f32 0.0, %v652
  %v654 = vpop.f32.mrb[0].mxu0
  %655 = vmatprep.mubr.f32.mxu0 0.0
  %656 = vmatmul.mubr.f32.gmra.mrb[0].mxu0 %v270
  %v657 = vpop.f32.mrb[0].mxu0
  %v658 = vadd.f32 0.0, %v657
  %v659 = vpop.f32.mrb[0].mxu0
  %660 = vdwg.mxu0
  %v661 = vpack.c.bf16 %v348, %v343
  %v662 = vpack.c.bf16 %v358, %v353
  %v663 = vpack.c.bf16 %v368, %v363
  %v664 = vpack.c.bf16 %v378, %v373
  %v665 = vpack.c.bf16 %v388, %v383
  %v666 = vpack.c.bf16 %v398, %v393
  %v667 = vpack.c.bf16 %v408, %v403
  %v668 = vpack.c.bf16 %v418, %v413
  %v669 = vpack.c.bf16 %v428, %v423
  %v670 = vpack.c.bf16 %v438, %v433
  %v671 = vpack.c.bf16 %v448, %v443
  %v672 = vpack.c.bf16 %v458, %v453
  %v673 = vpack.c.bf16 %v468, %v463
  %v674 = vpack.c.bf16 %v478, %v473
  %v675 = vpack.c.bf16 %v488, %v483
  %v676 = vpack.c.bf16 %v498, %v493
  %v677 = vpack.c.bf16 %v508, %v503
  %v678 = vpack.c.bf16 %v518, %v513
  %v679 = vpack.c.bf16 %v528, %v523
  %v680 = vpack.c.bf16 %v538, %v533
  %v681 = vpack.c.bf16 %v548, %v543
  %v682 = vpack.c.bf16 %v558, %v553
  %v683 = vpack.c.bf16 %v568, %v563
  %v684 = vpack.c.bf16 %v578, %v573
  %v685 = vpack.c.bf16 %v588, %v583
  %v686 = vpack.c.bf16 %v598, %v593
  %v687 = vpack.c.bf16 %v608, %v603
  %v688 = vpack.c.bf16 %v618, %v613
  %v689 = vpack.c.bf16 %v628, %v623
  %v690 = vpack.c.bf16 %v638, %v633
  %v691 = vpack.c.bf16 %v648, %v643
  %v692 = vpack.c.bf16 %v658, %v653
  %v725 = vunpack.c.l.b16 %v661
  %v726 = vunpack.c.h.b16 %v661
  %v727 = vunpack.c.l.b16 %v662
  %v728 = vunpack.c.h.b16 %v662
  %v729 = vunpack.c.l.b16 %v663
  %v730 = vunpack.c.h.b16 %v663
  %v731 = vunpack.c.l.b16 %v664
  %v732 = vunpack.c.h.b16 %v664
  %v733 = vunpack.c.l.b16 %v665
  %v734 = vunpack.c.h.b16 %v665
  %v735 = vunpack.c.l.b16 %v666
  %v736 = vunpack.c.h.b16 %v666
  %v737 = vunpack.c.l.b16 %v667
  %v738 = vunpack.c.h.b16 %v667
  %v739 = vunpack.c.l.b16 %v668
  %v740 = vunpack.c.h.b16 %v668
  %v741 = vunpack.c.l.b16 %v669
  %v742 = vunpack.c.h.b16 %v669
  %v743 = vunpack.c.l.b16 %v670
  %v744 = vunpack.c.h.b16 %v670
  %v745 = vunpack.c.l.b16 %v671
  %v746 = vunpack.c.h.b16 %v671
  %v747 = vunpack.c.l.b16 %v672
  %v748 = vunpack.c.h.b16 %v672
  %v749 = vunpack.c.l.b16 %v673
  %v750 = vunpack.c.h.b16 %v673
  %v751 = vunpack.c.l.b16 %v674
  %v752 = vunpack.c.h.b16 %v674
  %v753 = vunpack.c.l.b16 %v675
  %v754 = vunpack.c.h.b16 %v675
  %v755 = vunpack.c.l.b16 %v676
  %v756 = vunpack.c.h.b16 %v676
  %v757 = vunpack.c.l.b16 %v677
  %v758 = vunpack.c.h.b16 %v677
  %v759 = vunpack.c.l.b16 %v678
  %v760 = vunpack.c.h.b16 %v678
  %v761 = vunpack.c.l.b16 %v679
  %v762 = vunpack.c.h.b16 %v679
  %v763 = vunpack.c.l.b16 %v680
  %v764 = vunpack.c.h.b16 %v680
  %v765 = vunpack.c.l.b16 %v681
  %v766 = vunpack.c.h.b16 %v681
  %v767 = vunpack.c.l.b16 %v682
  %v768 = vunpack.c.h.b16 %v682
  %v769 = vunpack.c.l.b16 %v683
  %v770 = vunpack.c.h.b16 %v683
  %v771 = vunpack.c.l.b16 %v684
  %v772 = vunpack.c.h.b16 %v684
  %v773 = vunpack.c.l.b16 %v685
  %v774 = vunpack.c.h.b16 %v685
  %v775 = vunpack.c.l.b16 %v686
  %v776 = vunpack.c.h.b16 %v686
  %v777 = vunpack.c.l.b16 %v687
  %v778 = vunpack.c.h.b16 %v687
  %v779 = vunpack.c.l.b16 %v688
  %v780 = vunpack.c.h.b16 %v688
  %v781 = vunpack.c.l.b16 %v689
  %v782 = vunpack.c.h.b16 %v689
  %v783 = vunpack.c.l.b16 %v690
  %v784 = vunpack.c.h.b16 %v690
  %v785 = vunpack.c.l.b16 %v691
  %v786 = vunpack.c.h.b16 %v691
  %v787 = vunpack.c.l.b16 %v692
  %v788 = vunpack.c.h.b16 %v692
  %v789 = vpack.c.b16 %v725, %v725
  %v790 = vpack.c.b16 %v726, %v726
  %v791 = vpack.c.b16 %v727, %v727
  %v792 = vpack.c.b16 %v728, %v728
  %v793 = vpack.c.b16 %v729, %v729
  %v794 = vpack.c.b16 %v730, %v730
  %v795 = vpack.c.b16 %v731, %v731
  %v796 = vpack.c.b16 %v732, %v732
  %v797 = vpack.c.b16 %v733, %v733
  %v798 = vpack.c.b16 %v734, %v734
  %v799 = vpack.c.b16 %v735, %v735
  %v800 = vpack.c.b16 %v736, %v736
  %v801 = vpack.c.b16 %v737, %v737
  %v802 = vpack.c.b16 %v738, %v738
  %v803 = vpack.c.b16 %v739, %v739
  %v804 = vpack.c.b16 %v740, %v740
  %v805 = vpack.c.b16 %v741, %v741
  %v806 = vpack.c.b16 %v742, %v742
  %v807 = vpack.c.b16 %v743, %v743
  %v808 = vpack.c.b16 %v744, %v744
  %v809 = vpack.c.b16 %v745, %v745
  %v810 = vpack.c.b16 %v746, %v746
  %v811 = vpack.c.b16 %v747, %v747
  %v812 = vpack.c.b16 %v748, %v748
  %v813 = vpack.c.b16 %v749, %v749
  %v814 = vpack.c.b16 %v750, %v750
  %v815 = vpack.c.b16 %v751, %v751
  %v816 = vpack.c.b16 %v752, %v752
  %v817 = vpack.c.b16 %v753, %v753
  %v818 = vpack.c.b16 %v754, %v754
  %v819 = vpack.c.b16 %v755, %v755
  %v820 = vpack.c.b16 %v756, %v756
  %v821 = vpack.c.b16 %v757, %v757
  %v822 = vpack.c.b16 %v758, %v758
  %v823 = vpack.c.b16 %v759, %v759
  %v824 = vpack.c.b16 %v760, %v760
  %v825 = vpack.c.b16 %v761, %v761
  %v826 = vpack.c.b16 %v762, %v762
  %v827 = vpack.c.b16 %v763, %v763
  %v828 = vpack.c.b16 %v764, %v764
  %v829 = vpack.c.b16 %v765, %v765
  %v830 = vpack.c.b16 %v766, %v766
  %v831 = vpack.c.b16 %v767, %v767
  %v832 = vpack.c.b16 %v768, %v768
  %v833 = vpack.c.b16 %v769, %v769
  %v834 = vpack.c.b16 %v770, %v770
  %v835 = vpack.c.b16 %v771, %v771
  %v836 = vpack.c.b16 %v772, %v772
  %v837 = vpack.c.b16 %v773, %v773
  %v838 = vpack.c.b16 %v774, %v774
  %v839 = vpack.c.b16 %v775, %v775
  %v840 = vpack.c.b16 %v776, %v776
  %v841 = vpack.c.b16 %v777, %v777
  %v842 = vpack.c.b16 %v778, %v778
  %v843 = vpack.c.b16 %v779, %v779
  %v844 = vpack.c.b16 %v780, %v780
  %v845 = vpack.c.b16 %v781, %v781
  %v846 = vpack.c.b16 %v782, %v782
  %v847 = vpack.c.b16 %v783, %v783
  %v848 = vpack.c.b16 %v784, %v784
  %v849 = vpack.c.b16 %v785, %v785
  %v850 = vpack.c.b16 %v786, %v786
  %v851 = vpack.c.b16 %v787, %v787
  %v852 = vpack.c.b16 %v788, %v788
  %vm917 = vcmask 11264
  %918 = vst.msk [vmem:[%s2] sm:$0xf] %vm917, %v789
  %919 = vst.msk [vmem:[%s2 + $0x4] sm:$0xf] %vm917, %v790
  %920 = vst.msk [vmem:[%s2 + $0x8] sm:$0xf] %vm917, %v791
  %921 = vst.msk [vmem:[%s2 + $0xc] sm:$0xf] %vm917, %v792
  %922 = vst.msk [vmem:[%s2 + $0x10] sm:$0xf] %vm917, %v793
  %923 = vst.msk [vmem:[%s2 + $0x14] sm:$0xf] %vm917, %v794
  %924 = vst.msk [vmem:[%s2 + $0x18] sm:$0xf] %vm917, %v795
  %925 = vst.msk [vmem:[%s2 + $0x1c] sm:$0xf] %vm917, %v796
  %926 = vst.msk [vmem:[%s2 + $0x20] sm:$0xf] %vm917, %v797
  %927 = vst.msk [vmem:[%s2 + $0x24] sm:$0xf] %vm917, %v798
  %928 = vst.msk [vmem:[%s2 + $0x28] sm:$0xf] %vm917, %v799
  %929 = vst.msk [vmem:[%s2 + $0x2c] sm:$0xf] %vm917, %v800
  %930 = vst.msk [vmem:[%s2 + $0x30] sm:$0xf] %vm917, %v801
  %931 = vst.msk [vmem:[%s2 + $0x34] sm:$0xf] %vm917, %v802
  %932 = vst.msk [vmem:[%s2 + $0x38] sm:$0xf] %vm917, %v803
  %933 = vst.msk [vmem:[%s2 + $0x3c] sm:$0xf] %vm917, %v804
  %934 = vst.msk [vmem:[%s2 + $0x40] sm:$0xf] %vm917, %v805
  %935 = vst.msk [vmem:[%s2 + $0x44] sm:$0xf] %vm917, %v806
  %936 = vst.msk [vmem:[%s2 + $0x48] sm:$0xf] %vm917, %v807
  %937 = vst.msk [vmem:[%s2 + $0x4c] sm:$0xf] %vm917, %v808
  %938 = vst.msk [vmem:[%s2 + $0x50] sm:$0xf] %vm917, %v809
  %939 = vst.msk [vmem:[%s2 + $0x54] sm:$0xf] %vm917, %v810
  %940 = vst.msk [vmem:[%s2 + $0x58] sm:$0xf] %vm917, %v811
  %941 = vst.msk [vmem:[%s2 + $0x5c] sm:$0xf] %vm917, %v812
  %942 = vst.msk [vmem:[%s2 + $0x60] sm:$0xf] %vm917, %v813
  %943 = vst.msk [vmem:[%s2 + $0x64] sm:$0xf] %vm917, %v814
  %944 = vst.msk [vmem:[%s2 + $0x68] sm:$0xf] %vm917, %v815
  %945 = vst.msk [vmem:[%s2 + $0x6c] sm:$0xf] %vm917, %v816
  %946 = vst.msk [vmem:[%s2 + $0x70] sm:$0xf] %vm917, %v817
  %947 = vst.msk [vmem:[%s2 + $0x74] sm:$0xf] %vm917, %v818
  %948 = vst.msk [vmem:[%s2 + $0x78] sm:$0xf] %vm917, %v819
  %949 = vst.msk [vmem:[%s2 + $0x7c] sm:$0xf] %vm917, %v820
  %950 = vst.msk [vmem:[%s2 + $0x80] sm:$0xf] %vm917, %v821
  %951 = vst.msk [vmem:[%s2 + $0x84] sm:$0xf] %vm917, %v822
  %952 = vst.msk [vmem:[%s2 + $0x88] sm:$0xf] %vm917, %v823
  %953 = vst.msk [vmem:[%s2 + $0x8c] sm:$0xf] %vm917, %v824
  %954 = vst.msk [vmem:[%s2 + $0x90] sm:$0xf] %vm917, %v825
  %955 = vst.msk [vmem:[%s2 + $0x94] sm:$0xf] %vm917, %v826
  %956 = vst.msk [vmem:[%s2 + $0x98] sm:$0xf] %vm917, %v827
  %957 = vst.msk [vmem:[%s2 + $0x9c] sm:$0xf] %vm917, %v828
  %958 = vst.msk [vmem:[%s2 + $0xa0] sm:$0xf] %vm917, %v829
  %959 = vst.msk [vmem:[%s2 + $0xa4] sm:$0xf] %vm917, %v830
  %960 = vst.msk [vmem:[%s2 + $0xa8] sm:$0xf] %vm917, %v831
  %961 = vst.msk [vmem:[%s2 + $0xac] sm:$0xf] %vm917, %v832
  %962 = vst.msk [vmem:[%s2 + $0xb0] sm:$0xf] %vm917, %v833
  %963 = vst.msk [vmem:[%s2 + $0xb4] sm:$0xf] %vm917, %v834
  %964 = vst.msk [vmem:[%s2 + $0xb8] sm:$0xf] %vm917, %v835
  %965 = vst.msk [vmem:[%s2 + $0xbc] sm:$0xf] %vm917, %v836
  %966 = vst.msk [vmem:[%s2 + $0xc0] sm:$0xf] %vm917, %v837
  %967 = vst.msk [vmem:[%s2 + $0xc4] sm:$0xf] %vm917, %v838
  %968 = vst.msk [vmem:[%s2 + $0xc8] sm:$0xf] %vm917, %v839
  %969 = vst.msk [vmem:[%s2 + $0xcc] sm:$0xf] %vm917, %v840
  %970 = vst.msk [vmem:[%s2 + $0xd0] sm:$0xf] %vm917, %v841
  %971 = vst.msk [vmem:[%s2 + $0xd4] sm:$0xf] %vm917, %v842
  %972 = vst.msk [vmem:[%s2 + $0xd8] sm:$0xf] %vm917, %v843
  %973 = vst.msk [vmem:[%s2 + $0xdc] sm:$0xf] %vm917, %v844
  %974 = vst.msk [vmem:[%s2 + $0xe0] sm:$0xf] %vm917, %v845
  %975 = vst.msk [vmem:[%s2 + $0xe4] sm:$0xf] %vm917, %v846
  %976 = vst.msk [vmem:[%s2 + $0xe8] sm:$0xf] %vm917, %v847
  %977 = vst.msk [vmem:[%s2 + $0xec] sm:$0xf] %vm917, %v848
  %978 = vst.msk [vmem:[%s2 + $0xf0] sm:$0xf] %vm917, %v849
  %979 = vst.msk [vmem:[%s2 + $0xf4] sm:$0xf] %vm917, %v850
  %980 = vst.msk [vmem:[%s2 + $0xf8] sm:$0xf] %vm917, %v851
  %981 = vst.msk [vmem:[%s2 + $0xfc] sm:$0xf] %vm917, %v852
  %vm982 = vcmask 15360
  %v983 = vsel %vm982, %v343, 0.0
  %v984 = vsel %vm982, %v348, 0.0
  %v985 = vadd.f32 %v983, %v984
  %v986 = vsel %vm982, %v353, 0.0
  %v987 = vadd.f32 %v985, %v986
  %v988 = vsel %vm982, %v358, 0.0
  %v989 = vadd.f32 %v987, %v988
  %v990 = vsel %vm982, %v363, 0.0
  %v991 = vadd.f32 %v989, %v990
  %v992 = vsel %vm982, %v368, 0.0
  %v993 = vadd.f32 %v991, %v992
  %v994 = vsel %vm982, %v373, 0.0
  %v995 = vadd.f32 %v993, %v994
  %v996 = vsel %vm982, %v378, 0.0
  %v997 = vadd.f32 %v995, %v996
  %v998 = vrot.slane %v997, 4
  %v999 = vadd.f32 %v997, %v998
  %v1000 = vrot.slane %v999, 2
  %v1001 = vadd.f32 %v999, %v1000
  %v1002 = vrot.slane %v1001, 1
  %v1003 = vadd.f32 %v1001, %v1002
  %v1004 = vsel %vm982, %v383, 0.0
  %v1005 = vsel %vm982, %v388, 0.0
  %v1006 = vadd.f32 %v1004, %v1005
  %v1007 = vsel %vm982, %v393, 0.0
  %v1008 = vadd.f32 %v1006, %v1007
  %v1009 = vsel %vm982, %v398, 0.0
  %v1010 = vadd.f32 %v1008, %v1009
  %v1011 = vsel %vm982, %v403, 0.0
  %v1012 = vadd.f32 %v1010, %v1011
  %v1013 = vsel %vm982, %v408, 0.0
  %v1014 = vadd.f32 %v1012, %v1013
  %v1015 = vsel %vm982, %v413, 0.0
  %v1016 = vadd.f32 %v1014, %v1015
  %v1017 = vsel %vm982, %v418, 0.0
  %v1018 = vadd.f32 %v1016, %v1017
  %v1019 = vrot.slane %v1018, 4
  %v1020 = vadd.f32 %v1018, %v1019
  %v1021 = vrot.slane %v1020, 2
  %v1022 = vadd.f32 %v1020, %v1021
  %v1023 = vrot.slane %v1022, 1
  %v1024 = vadd.f32 %v1022, %v1023
  %v1025 = vsel %vm982, %v423, 0.0
  %v1026 = vsel %vm982, %v428, 0.0
  %v1027 = vadd.f32 %v1025, %v1026
  %v1028 = vsel %vm982, %v433, 0.0
  %v1029 = vadd.f32 %v1027, %v1028
  %v1030 = vsel %vm982, %v438, 0.0
  %v1031 = vadd.f32 %v1029, %v1030
  %v1032 = vsel %vm982, %v443, 0.0
  %v1033 = vadd.f32 %v1031, %v1032
  %v1034 = vsel %vm982, %v448, 0.0
  %v1035 = vadd.f32 %v1033, %v1034
  %v1036 = vsel %vm982, %v453, 0.0
  %v1037 = vadd.f32 %v1035, %v1036
  %v1038 = vsel %vm982, %v458, 0.0
  %v1039 = vadd.f32 %v1037, %v1038
  %v1040 = vrot.slane %v1039, 4
  %v1041 = vadd.f32 %v1039, %v1040
  %v1042 = vrot.slane %v1041, 2
  %v1043 = vadd.f32 %v1041, %v1042
  %v1044 = vrot.slane %v1043, 1
  %v1045 = vadd.f32 %v1043, %v1044
  %v1046 = vsel %vm982, %v463, 0.0
  %v1047 = vsel %vm982, %v468, 0.0
  %v1048 = vadd.f32 %v1046, %v1047
  %v1049 = vsel %vm982, %v473, 0.0
  %v1050 = vadd.f32 %v1048, %v1049
  %v1051 = vsel %vm982, %v478, 0.0
  %v1052 = vadd.f32 %v1050, %v1051
  %v1053 = vsel %vm982, %v483, 0.0
  %v1054 = vadd.f32 %v1052, %v1053
  %v1055 = vsel %vm982, %v488, 0.0
  %v1056 = vadd.f32 %v1054, %v1055
  %v1057 = vsel %vm982, %v493, 0.0
  %v1058 = vadd.f32 %v1056, %v1057
  %v1059 = vsel %vm982, %v498, 0.0
  %v1060 = vadd.f32 %v1058, %v1059
  %v1061 = vrot.slane %v1060, 4
  %v1062 = vadd.f32 %v1060, %v1061
  %v1063 = vrot.slane %v1062, 2
  %v1064 = vadd.f32 %v1062, %v1063
  %v1065 = vrot.slane %v1064, 1
  %v1066 = vadd.f32 %v1064, %v1065
  %v1067 = vsel %vm982, %v503, 0.0
  %v1068 = vsel %vm982, %v508, 0.0
  %v1069 = vadd.f32 %v1067, %v1068
  %v1070 = vsel %vm982, %v513, 0.0
  %v1071 = vadd.f32 %v1069, %v1070
  %v1072 = vsel %vm982, %v518, 0.0
  %v1073 = vadd.f32 %v1071, %v1072
  %v1074 = vsel %vm982, %v523, 0.0
  %v1075 = vadd.f32 %v1073, %v1074
  %v1076 = vsel %vm982, %v528, 0.0
  %v1077 = vadd.f32 %v1075, %v1076
  %v1078 = vsel %vm982, %v533, 0.0
  %v1079 = vadd.f32 %v1077, %v1078
  %v1080 = vsel %vm982, %v538, 0.0
  %v1081 = vadd.f32 %v1079, %v1080
  %v1082 = vrot.slane %v1081, 4
  %v1083 = vadd.f32 %v1081, %v1082
  %v1084 = vrot.slane %v1083, 2
  %v1085 = vadd.f32 %v1083, %v1084
  %v1086 = vrot.slane %v1085, 1
  %v1087 = vadd.f32 %v1085, %v1086
  %v1088 = vsel %vm982, %v543, 0.0
  %v1089 = vsel %vm982, %v548, 0.0
  %v1090 = vadd.f32 %v1088, %v1089
  %v1091 = vsel %vm982, %v553, 0.0
  %v1092 = vadd.f32 %v1090, %v1091
  %v1093 = vsel %vm982, %v558, 0.0
  %v1094 = vadd.f32 %v1092, %v1093
  %v1095 = vsel %vm982, %v563, 0.0
  %v1096 = vadd.f32 %v1094, %v1095
  %v1097 = vsel %vm982, %v568, 0.0
  %v1098 = vadd.f32 %v1096, %v1097
  %v1099 = vsel %vm982, %v573, 0.0
  %v1100 = vadd.f32 %v1098, %v1099
  %v1101 = vsel %vm982, %v578, 0.0
  %v1102 = vadd.f32 %v1100, %v1101
  %v1103 = vrot.slane %v1102, 4
  %v1104 = vadd.f32 %v1102, %v1103
  %v1105 = vrot.slane %v1104, 2
  %v1106 = vadd.f32 %v1104, %v1105
  %v1107 = vrot.slane %v1106, 1
  %v1108 = vadd.f32 %v1106, %v1107
  %v1109 = vsel %vm982, %v583, 0.0
  %v1110 = vsel %vm982, %v588, 0.0
  %v1111 = vadd.f32 %v1109, %v1110
  %v1112 = vsel %vm982, %v593, 0.0
  %v1113 = vadd.f32 %v1111, %v1112
  %v1114 = vsel %vm982, %v598, 0.0
  %v1115 = vadd.f32 %v1113, %v1114
  %v1116 = vsel %vm982, %v603, 0.0
  %v1117 = vadd.f32 %v1115, %v1116
  %v1118 = vsel %vm982, %v608, 0.0
  %v1119 = vadd.f32 %v1117, %v1118
  %v1120 = vsel %vm982, %v613, 0.0
  %v1121 = vadd.f32 %v1119, %v1120
  %v1122 = vsel %vm982, %v618, 0.0
  %v1123 = vadd.f32 %v1121, %v1122
  %v1124 = vrot.slane %v1123, 4
  %v1125 = vadd.f32 %v1123, %v1124
  %v1126 = vrot.slane %v1125, 2
  %v1127 = vadd.f32 %v1125, %v1126
  %v1128 = vrot.slane %v1127, 1
  %v1129 = vadd.f32 %v1127, %v1128
  %v1130 = vsel %vm982, %v623, 0.0
  %v1131 = vsel %vm982, %v628, 0.0
  %v1132 = vadd.f32 %v1130, %v1131
  %v1133 = vsel %vm982, %v633, 0.0
  %v1134 = vadd.f32 %v1132, %v1133
  %v1135 = vsel %vm982, %v638, 0.0
  %v1136 = vadd.f32 %v1134, %v1135
  %v1137 = vsel %vm982, %v643, 0.0
  %v1138 = vadd.f32 %v1136, %v1137
  %v1139 = vsel %vm982, %v648, 0.0
  %v1140 = vadd.f32 %v1138, %v1139
  %v1141 = vsel %vm982, %v653, 0.0
  %v1142 = vadd.f32 %v1140, %v1141
  %v1143 = vsel %vm982, %v658, 0.0
  %v1144 = vadd.f32 %v1142, %v1143
  %v1145 = vrot.slane %v1144, 4
  %v1146 = vadd.f32 %v1144, %v1145
  %v1147 = vrot.slane %v1146, 2
  %v1148 = vadd.f32 %v1146, %v1147
  %v1149 = vrot.slane %v1148, 1
  %v1150 = vadd.f32 %v1148, %v1149
  %vm1159 = vcmask 1041409
  %v1160 = vsel %vm1159, %v1024, %v1003
  %vm1161 = vcmask 1042434
  %v1162 = vsel %vm1161, %v1045, %v1160
  %vm1163 = vcmask 1043459
  %v1164 = vsel %vm1163, %v1066, %v1162
  %vm1165 = vcmask 1044484
  %v1166 = vsel %vm1165, %v1087, %v1164
  %vm1167 = vcmask 1045509
  %v1168 = vsel %vm1167, %v1108, %v1166
  %vm1169 = vcmask 1046534
  %v1170 = vsel %vm1169, %v1129, %v1168
  %vm1171 = vcmask 1047559
  %v1172 = vsel %vm1171, %v1150, %v1170
  %1174 = vst.msk [vmem:[%s3] sm:$0xff] %vm982, %v1172
  %v1175 = vmul.f32 %v343, %v343
  %v1176 = vmul.f32 %v348, %v348
  %v1177 = vmul.f32 %v353, %v353
  %v1178 = vmul.f32 %v358, %v358
  %v1179 = vmul.f32 %v363, %v363
  %v1180 = vmul.f32 %v368, %v368
  %v1181 = vmul.f32 %v373, %v373
  %v1182 = vmul.f32 %v378, %v378
  %v1183 = vmul.f32 %v383, %v383
  %v1184 = vmul.f32 %v388, %v388
  %v1185 = vmul.f32 %v393, %v393
  %v1186 = vmul.f32 %v398, %v398
  %v1187 = vmul.f32 %v403, %v403
  %v1188 = vmul.f32 %v408, %v408
  %v1189 = vmul.f32 %v413, %v413
  %v1190 = vmul.f32 %v418, %v418
  %v1191 = vmul.f32 %v423, %v423
  %v1192 = vmul.f32 %v428, %v428
  %v1193 = vmul.f32 %v433, %v433
  %v1194 = vmul.f32 %v438, %v438
  %v1195 = vmul.f32 %v443, %v443
  %v1196 = vmul.f32 %v448, %v448
  %v1197 = vmul.f32 %v453, %v453
  %v1198 = vmul.f32 %v458, %v458
  %v1199 = vmul.f32 %v463, %v463
  %v1200 = vmul.f32 %v468, %v468
  %v1201 = vmul.f32 %v473, %v473
  %v1202 = vmul.f32 %v478, %v478
  %v1203 = vmul.f32 %v483, %v483
  %v1204 = vmul.f32 %v488, %v488
  %v1205 = vmul.f32 %v493, %v493
  %v1206 = vmul.f32 %v498, %v498
  %v1207 = vmul.f32 %v503, %v503
  %v1208 = vmul.f32 %v508, %v508
  %v1209 = vmul.f32 %v513, %v513
  %v1210 = vmul.f32 %v518, %v518
  %v1211 = vmul.f32 %v523, %v523
  %v1212 = vmul.f32 %v528, %v528
  %v1213 = vmul.f32 %v533, %v533
  %v1214 = vmul.f32 %v538, %v538
  %v1215 = vmul.f32 %v543, %v543
  %v1216 = vmul.f32 %v548, %v548
  %v1217 = vmul.f32 %v553, %v553
  %v1218 = vmul.f32 %v558, %v558
  %v1219 = vmul.f32 %v563, %v563
  %v1220 = vmul.f32 %v568, %v568
  %v1221 = vmul.f32 %v573, %v573
  %v1222 = vmul.f32 %v578, %v578
  %v1223 = vmul.f32 %v583, %v583
  %v1224 = vmul.f32 %v588, %v588
  %v1225 = vmul.f32 %v593, %v593
  %v1226 = vmul.f32 %v598, %v598
  %v1227 = vmul.f32 %v603, %v603
  %v1228 = vmul.f32 %v608, %v608
  %v1229 = vmul.f32 %v613, %v613
  %v1230 = vmul.f32 %v618, %v618
  %v1231 = vmul.f32 %v623, %v623
  %v1232 = vmul.f32 %v628, %v628
  %v1233 = vmul.f32 %v633, %v633
  %v1234 = vmul.f32 %v638, %v638
  %v1235 = vmul.f32 %v643, %v643
  %v1236 = vmul.f32 %v648, %v648
  %v1237 = vmul.f32 %v653, %v653
  %v1238 = vmul.f32 %v658, %v658
  %v1239 = vsel %vm982, %v1175, 0.0
  %v1240 = vsel %vm982, %v1176, 0.0
  %v1241 = vadd.f32 %v1239, %v1240
  %v1242 = vsel %vm982, %v1177, 0.0
  %v1243 = vadd.f32 %v1241, %v1242
  %v1244 = vsel %vm982, %v1178, 0.0
  %v1245 = vadd.f32 %v1243, %v1244
  %v1246 = vsel %vm982, %v1179, 0.0
  %v1247 = vadd.f32 %v1245, %v1246
  %v1248 = vsel %vm982, %v1180, 0.0
  %v1249 = vadd.f32 %v1247, %v1248
  %v1250 = vsel %vm982, %v1181, 0.0
  %v1251 = vadd.f32 %v1249, %v1250
  %v1252 = vsel %vm982, %v1182, 0.0
  %v1253 = vadd.f32 %v1251, %v1252
  %v1254 = vrot.slane %v1253, 4
  %v1255 = vadd.f32 %v1253, %v1254
  %v1256 = vrot.slane %v1255, 2
  %v1257 = vadd.f32 %v1255, %v1256
  %v1258 = vrot.slane %v1257, 1
  %v1259 = vadd.f32 %v1257, %v1258
  %v1260 = vsel %vm982, %v1183, 0.0
  %v1261 = vsel %vm982, %v1184, 0.0
  %v1262 = vadd.f32 %v1260, %v1261
  %v1263 = vsel %vm982, %v1185, 0.0
  %v1264 = vadd.f32 %v1262, %v1263
  %v1265 = vsel %vm982, %v1186, 0.0
  %v1266 = vadd.f32 %v1264, %v1265
  %v1267 = vsel %vm982, %v1187, 0.0
  %v1268 = vadd.f32 %v1266, %v1267
  %v1269 = vsel %vm982, %v1188, 0.0
  %v1270 = vadd.f32 %v1268, %v1269
  %v1271 = vsel %vm982, %v1189, 0.0
  %v1272 = vadd.f32 %v1270, %v1271
  %v1273 = vsel %vm982, %v1190, 0.0
  %v1274 = vadd.f32 %v1272, %v1273
  %v1275 = vrot.slane %v1274, 4
  %v1276 = vadd.f32 %v1274, %v1275
  %v1277 = vrot.slane %v1276, 2
  %v1278 = vadd.f32 %v1276, %v1277
  %v1279 = vrot.slane %v1278, 1
  %v1280 = vadd.f32 %v1278, %v1279
  %v1281 = vsel %vm982, %v1191, 0.0
  %v1282 = vsel %vm982, %v1192, 0.0
  %v1283 = vadd.f32 %v1281, %v1282
  %v1284 = vsel %vm982, %v1193, 0.0
  %v1285 = vadd.f32 %v1283, %v1284
  %v1286 = vsel %vm982, %v1194, 0.0
  %v1287 = vadd.f32 %v1285, %v1286
  %v1288 = vsel %vm982, %v1195, 0.0
  %v1289 = vadd.f32 %v1287, %v1288
  %v1290 = vsel %vm982, %v1196, 0.0
  %v1291 = vadd.f32 %v1289, %v1290
  %v1292 = vsel %vm982, %v1197, 0.0
  %v1293 = vadd.f32 %v1291, %v1292
  %v1294 = vsel %vm982, %v1198, 0.0
  %v1295 = vadd.f32 %v1293, %v1294
  %v1296 = vrot.slane %v1295, 4
  %v1297 = vadd.f32 %v1295, %v1296
  %v1298 = vrot.slane %v1297, 2
  %v1299 = vadd.f32 %v1297, %v1298
  %v1300 = vrot.slane %v1299, 1
  %v1301 = vadd.f32 %v1299, %v1300
  %v1302 = vsel %vm982, %v1199, 0.0
  %v1303 = vsel %vm982, %v1200, 0.0
  %v1304 = vadd.f32 %v1302, %v1303
  %v1305 = vsel %vm982, %v1201, 0.0
  %v1306 = vadd.f32 %v1304, %v1305
  %v1307 = vsel %vm982, %v1202, 0.0
  %v1308 = vadd.f32 %v1306, %v1307
  %v1309 = vsel %vm982, %v1203, 0.0
  %v1310 = vadd.f32 %v1308, %v1309
  %v1311 = vsel %vm982, %v1204, 0.0
  %v1312 = vadd.f32 %v1310, %v1311
  %v1313 = vsel %vm982, %v1205, 0.0
  %v1314 = vadd.f32 %v1312, %v1313
  %v1315 = vsel %vm982, %v1206, 0.0
  %v1316 = vadd.f32 %v1314, %v1315
  %v1317 = vrot.slane %v1316, 4
  %v1318 = vadd.f32 %v1316, %v1317
  %v1319 = vrot.slane %v1318, 2
  %v1320 = vadd.f32 %v1318, %v1319
  %v1321 = vrot.slane %v1320, 1
  %v1322 = vadd.f32 %v1320, %v1321
  %v1323 = vsel %vm982, %v1207, 0.0
  %v1324 = vsel %vm982, %v1208, 0.0
  %v1325 = vadd.f32 %v1323, %v1324
  %v1326 = vsel %vm982, %v1209, 0.0
  %v1327 = vadd.f32 %v1325, %v1326
  %v1328 = vsel %vm982, %v1210, 0.0
  %v1329 = vadd.f32 %v1327, %v1328
  %v1330 = vsel %vm982, %v1211, 0.0
  %v1331 = vadd.f32 %v1329, %v1330
  %v1332 = vsel %vm982, %v1212, 0.0
  %v1333 = vadd.f32 %v1331, %v1332
  %v1334 = vsel %vm982, %v1213, 0.0
  %v1335 = vadd.f32 %v1333, %v1334
  %v1336 = vsel %vm982, %v1214, 0.0
  %v1337 = vadd.f32 %v1335, %v1336
  %v1338 = vrot.slane %v1337, 4
  %v1339 = vadd.f32 %v1337, %v1338
  %v1340 = vrot.slane %v1339, 2
  %v1341 = vadd.f32 %v1339, %v1340
  %v1342 = vrot.slane %v1341, 1
  %v1343 = vadd.f32 %v1341, %v1342
  %v1344 = vsel %vm982, %v1215, 0.0
  %v1345 = vsel %vm982, %v1216, 0.0
  %v1346 = vadd.f32 %v1344, %v1345
  %v1347 = vsel %vm982, %v1217, 0.0
  %v1348 = vadd.f32 %v1346, %v1347
  %v1349 = vsel %vm982, %v1218, 0.0
  %v1350 = vadd.f32 %v1348, %v1349
  %v1351 = vsel %vm982, %v1219, 0.0
  %v1352 = vadd.f32 %v1350, %v1351
  %v1353 = vsel %vm982, %v1220, 0.0
  %v1354 = vadd.f32 %v1352, %v1353
  %v1355 = vsel %vm982, %v1221, 0.0
  %v1356 = vadd.f32 %v1354, %v1355
  %v1357 = vsel %vm982, %v1222, 0.0
  %v1358 = vadd.f32 %v1356, %v1357
  %v1359 = vrot.slane %v1358, 4
  %v1360 = vadd.f32 %v1358, %v1359
  %v1361 = vrot.slane %v1360, 2
  %v1362 = vadd.f32 %v1360, %v1361
  %v1363 = vrot.slane %v1362, 1
  %v1364 = vadd.f32 %v1362, %v1363
  %v1365 = vsel %vm982, %v1223, 0.0
  %v1366 = vsel %vm982, %v1224, 0.0
  %v1367 = vadd.f32 %v1365, %v1366
  %v1368 = vsel %vm982, %v1225, 0.0
  %v1369 = vadd.f32 %v1367, %v1368
  %v1370 = vsel %vm982, %v1226, 0.0
  %v1371 = vadd.f32 %v1369, %v1370
  %v1372 = vsel %vm982, %v1227, 0.0
  %v1373 = vadd.f32 %v1371, %v1372
  %v1374 = vsel %vm982, %v1228, 0.0
  %v1375 = vadd.f32 %v1373, %v1374
  %v1376 = vsel %vm982, %v1229, 0.0
  %v1377 = vadd.f32 %v1375, %v1376
  %v1378 = vsel %vm982, %v1230, 0.0
  %v1379 = vadd.f32 %v1377, %v1378
  %v1380 = vrot.slane %v1379, 4
  %v1381 = vadd.f32 %v1379, %v1380
  %v1382 = vrot.slane %v1381, 2
  %v1383 = vadd.f32 %v1381, %v1382
  %v1384 = vrot.slane %v1383, 1
  %v1385 = vadd.f32 %v1383, %v1384
  %v1386 = vsel %vm982, %v1231, 0.0
  %v1387 = vsel %vm982, %v1232, 0.0
  %v1388 = vadd.f32 %v1386, %v1387
  %v1389 = vsel %vm982, %v1233, 0.0
  %v1390 = vadd.f32 %v1388, %v1389
  %v1391 = vsel %vm982, %v1234, 0.0
  %v1392 = vadd.f32 %v1390, %v1391
  %v1393 = vsel %vm982, %v1235, 0.0
  %v1394 = vadd.f32 %v1392, %v1393
  %v1395 = vsel %vm982, %v1236, 0.0
  %v1396 = vadd.f32 %v1394, %v1395
  %v1397 = vsel %vm982, %v1237, 0.0
  %v1398 = vadd.f32 %v1396, %v1397
  %v1399 = vsel %vm982, %v1238, 0.0
  %v1400 = vadd.f32 %v1398, %v1399
  %v1401 = vrot.slane %v1400, 4
  %v1402 = vadd.f32 %v1400, %v1401
  %v1403 = vrot.slane %v1402, 2
  %v1404 = vadd.f32 %v1402, %v1403
  %v1405 = vrot.slane %v1404, 1
  %v1406 = vadd.f32 %v1404, %v1405
  %v1415 = vsel %vm1159, %v1280, %v1259
  %v1416 = vsel %vm1161, %v1301, %v1415
  %v1417 = vsel %vm1163, %v1322, %v1416
  %v1418 = vsel %vm1165, %v1343, %v1417
  %v1419 = vsel %vm1167, %v1364, %v1418
  %v1420 = vsel %vm1169, %v1385, %v1419
  %v1421 = vsel %vm1171, %v1406, %v1420
  %1423 = vst.msk [vmem:[%s4] sm:$0xff] %vm982, %v1421
  // Predicated region
  $region10: #{tpu_custom_call.1} parent=0 // pred_check
    _
  $region11: #{tpu_custom_call.1} parent=0 // pred_check_branch
    %1425 = sbr.rel (0) target = $region13
  $region12: #{tpu_custom_call.1} parent=0 // pred_region
    _
  $region13: #{tpu_custom_call.1} parent=0 // pred_fallthru
    _
  // Predicated region
  $region14: #{tpu_custom_call.1} parent=0 // pred_check
    _
  $region15: #{tpu_custom_call.1} parent=0 // pred_check_branch
    %1427 = sbr.rel (0) target = $region17
  $region16: #{tpu_custom_call.1} parent=0 // pred_region
    _
  $region17: #{tpu_custom_call.1} parent=0 // pred_fallthru
    _
  // Predicated region
  $region18: #{tpu_custom_call.1} parent=0 // pred_check
    _
  $region19: #{tpu_custom_call.1} parent=0 // pred_check_branch
    %1429 = sbr.rel (0) target = $region21
  $region20: #{tpu_custom_call.1} parent=0 // pred_region
    _
  $region21: #{tpu_custom_call.1} parent=0 // pred_fallthru
    _
  // Predicated region
  $region22: #{tpu_custom_call.1} parent=0 // pred_check
    _
  $region23: #{tpu_custom_call.1} parent=0 // pred_check_branch
    %1431 = sbr.rel (0) target = $region25
  $region24: #{tpu_custom_call.1} parent=0 // pred_region
    _
  $region25: #{tpu_custom_call.1} parent=0 // pred_fallthru
    _
  // Predicated region
  $region26: #{tpu_custom_call.1} parent=0 // pred_check
    _
  $region27: #{tpu_custom_call.1} parent=0 // pred_check_branch
    %1433 = sbr.rel (0) target = $region29
  $region28: #{tpu_custom_call.1} parent=0 // pred_region
    _
  $region29: #{tpu_custom_call.1} parent=0 // pred_fallthru
    _
  // Predicated region
  $region30: #{tpu_custom_call.1} parent=0 // pred_check
    _
  $region31: #{tpu_custom_call.1} parent=0 // pred_check_branch
    %1435 = sbr.rel (0) target = $region33
  $region32: #{tpu_custom_call.1} parent=0 // pred_region
    _
  $region33: #{tpu_custom_call.1} parent=0 // pred_fallthru
    _

</llo_original>
